<compile_context>
chip_gen: v7x
topology: tpu7x:2x2x1
jax: 0.10.0
libtpu: 0.0.40
codegen_flags: <defaults>
</compile_context>

<pallas_src>
import jax
import jax.numpy as jnp
from jax.experimental import pallas as pl
from jax.experimental.pallas import tpu as pltpu

LANE = 128                        # vreg lane width (last dim)
MAX_TILE_ROWS = 4096              # 4096*128*4B = 2 MiB per f32 buffer per step
FAST_PATH_MAX_ELEMS = 64 * 1024   # below this, plain jnp beats kernel dispatch


def _sublane_for(dtype) -> int:
    # f32 -> 8, bf16/f16 -> 16, int8/fp8 -> 32 (sub-32-bit dtypes pack sublanes)
    return max(8, 32 // jnp.dtype(dtype).itemsize)


def _round_up(x: int, m: int) -> int:
    return ((x + m - 1) // m) * m


def _choose_tile_rows(rows: int, sublane: int) -> int:
    """Row tile: >=2 grid steps when possible (v7x dual-TC), capped at MAX_TILE_ROWS."""
    if rows <= sublane:
        # Single block equal to the full array (allowed even if rows % 8 != 0).
        return rows
    half = _round_up(pl.cdiv(rows, 2), sublane)
    return min(MAX_TILE_ROWS, half)


def _affine_kernel(w_ref, b_ref, x_ref, o_ref):
    # y = x * w + b  -- pure VPU; w/b are SMEM scalars (no MXU, no padded weight tile).
    w = w_ref[0, 0]
    b = b_ref[0, 0]
    y = x_ref[...].astype(jnp.float32) * w + b
    o_ref[...] = y.astype(o_ref.dtype)


def linear_forward(x, w, b, *, force_pallas: bool = False):
    """Forward of nn.Linear(1, 1): y = x @ w.T + b, specialized to a scalar affine."""
    N, F = x.shape
    O, Fi = w.shape
    assert F == 1 and O == 1 and Fi == 1, "kernel is specialized for Linear(1, 1)"
    # TODO(synk): if in_features/out_features ever grow >1, switch to a tiled MXU
    # matmul contracting over the feature dim instead of this VPU path.

    w_s = w.reshape(1, 1).astype(jnp.float32)
    b_s = b.reshape(1, 1).astype(jnp.float32)

    # ---- tiny-batch fast path: XLA fuses the scalar affine, no padding/dispatch ----
    if not force_pallas and N * F < FAST_PATH_MAX_ELEMS:
        y = x.astype(jnp.float32) * w_s[0, 0] + b_s[0, 0]
        return y.astype(x.dtype).reshape(N, O)

    # ---- lane-dense layout: (N, 1) -> (rows, 128) view with minimal padding ----
    sublane = _sublane_for(x.dtype)
    rows = max(1, pl.cdiv(N, LANE))
    n_pad = rows * LANE

    x_flat = x.reshape(-1)
    if n_pad != N:                       # pad only the sub-128 tail
        x_flat = jnp.pad(x_flat, (0, n_pad - N))
    x2d = x_flat.reshape(rows, LANE)     # zero-copy when N % 128 == 0

    tile_rows = _choose_tile_rows(rows, sublane)
    grid = (pl.cdiv(rows, tile_rows),)   # partial last block masked by Pallas

    y2d = pl.pallas_call(
        _affine_kernel,
        out_shape=jax.ShapeDtypeStruct((rows, LANE), x.dtype),
        grid=grid,
        in_specs=[
            pl.BlockSpec(memory_space=pltpu.MemorySpace.SMEM),   # w: (1,1) scalar
            pl.BlockSpec(memory_space=pltpu.MemorySpace.SMEM),   # b: (1,1) scalar
            pl.BlockSpec((tile_rows, LANE), lambda i: (i, 0)),   # x: lane-dense tile
        ],
        out_specs=pl.BlockSpec((tile_rows, LANE), lambda i: (i, 0)),
        compiler_params=pltpu.CompilerParams(
            dimension_semantics=("parallel",),   # batch tiles are independent
        ),
    )(w_s, b_s, x2d)

    if n_pad == N:                       # zero-copy path: reshape only
        return y2d.reshape(N, O)
    return y2d.reshape(-1)[:N].reshape(N, O)


if __name__ == "__main__":
    key = jax.random.PRNGKey(0)
    kx, kw, kb = jax.random.split(key, 3)

    # Parameter init matching PyTorch Linear's U(-1/sqrt(in), 1/sqrt(in)) = U(-1, 1)
    w = jax.random.uniform(kw, (1, 1), dtype=jnp.float32, minval=-1.0, maxval=1.0)
    b = jax.random.uniform(kb, (1,), dtype=jnp.float32, minval=-1.0, maxval=1.0)

    # Small shape consistent with nn.Linear(1, 1): batch=8, in_features=1
    # (takes the tiny-batch fast path, as it would in production).
    x_small = jax.random.normal(kx, (8, 1), dtype=jnp.float32)
    y_small = linear_forward(x_small, w, b)
    jax.block_until_ready(y_small)
    assert y_small.shape == (8, 1)
    assert jnp.allclose(y_small, x_small @ w.T + b, atol=1e-5, rtol=1e-5)

    # Force the Pallas path on a few small shapes to exercise:
    #  * N=8    -> rows=1, single full-array block
    #  * N=256  -> rows=2, zero-copy lane-aligned path (N % 128 == 0)
    #  * N=3000 -> rows=24, 2 grid steps of 16 rows with a partial last block
    for n in (8, 256, 3000):
        xn = jax.random.normal(jax.random.fold_in(kx, n), (n, 1), dtype=jnp.float32)
        yn = linear_forward(xn, w, b, force_pallas=True)
        jax.block_until_ready(yn)
        assert yn.shape == (n, 1)
        assert jnp.allclose(yn, xn @ w.T + b, atol=1e-5, rtol=1e-5)

    print("KERNEL_OK")
</pallas_src>

<mosaic_0001>
module attributes {stable_mosaic.version = 11 : i64} {
  func.func @_affine_kernel(%arg0: i32, %arg1: memref<1x1xf32, #tpu.memory_space<smem>>, %arg2: memref<1x1xf32, #tpu.memory_space<smem>>, %arg3: memref<1x128xf32, #tpu.memory_space<vmem>>, %arg4: memref<1x128xf32, #tpu.memory_space<vmem>>) attributes {dimension_semantics = [#tpu.dimension_semantics<parallel>], iteration_bounds = array<i64: 1>, scalar_prefetch = 0 : i64, scratch_operands = 0 : i64, tpu.core_type = #tpu.core_type<tc>, window_params = [{transform_indices = @transform_0, window_bounds = array<i64: 1, 1>}, {transform_indices = @transform_1, window_bounds = array<i64: 1, 1>}, {transform_indices = @transform_2, window_bounds = array<i64: 1, 128>}, {transform_indices = @transform_3, window_bounds = array<i64: 1, 128>}]} {
    %c0 = arith.constant 0 : index
    %c0_0 = arith.constant 0 : index
    %0 = memref.load %arg1[%c0, %c0_0] : memref<1x1xf32, #tpu.memory_space<smem>>
    %c0_1 = arith.constant 0 : index
    %c0_2 = arith.constant 0 : index
    %1 = memref.load %arg2[%c0_1, %c0_2] : memref<1x1xf32, #tpu.memory_space<smem>>
    %c0_3 = arith.constant 0 : index
    %c0_4 = arith.constant 0 : index
    %2 = vector.load %arg3[%c0_3, %c0_4] : memref<1x128xf32, #tpu.memory_space<vmem>>, vector<1x128xf32>
    %3 = vector.broadcast %0 : f32 to vector<1x128xf32>
    %4 = arith.mulf %2, %3 : vector<1x128xf32>
    %5 = vector.broadcast %1 : f32 to vector<1x128xf32>
    %6 = arith.addf %4, %5 : vector<1x128xf32>
    %c0_5 = arith.constant 0 : index
    %c0_6 = arith.constant 0 : index
    %7 = vector.load %arg4[%c0_5, %c0_6] : memref<1x128xf32, #tpu.memory_space<vmem>>, vector<1x128xf32>
    tpu.vector_store %arg4[%c0_5, %c0_6], %6 {strides = array<i32>} : memref<1x128xf32, #tpu.memory_space<vmem>>, vector<1x128xf32>,
    return
  }
  func.func @transform_0(%arg0: i32) -> (i32, i32) {
    %c0_i32 = arith.constant 0 : i32
    %c0_i32_0 = arith.constant 0 : i32
    %c0_i32_1 = arith.constant 0 : i32
    return %c0_i32, %c0_i32_0 : i32, i32
  }
  func.func @transform_1(%arg0: i32) -> (i32, i32) {
    %c0_i32 = arith.constant 0 : i32
    %c0_i32_0 = arith.constant 0 : i32
    %c0_i32_1 = arith.constant 0 : i32
    return %c0_i32, %c0_i32_0 : i32, i32
  }
  func.func @transform_2(%arg0: i32) -> (i32, i32) {
    %c0_i32 = arith.constant 0 : i32
    %c0_i32_0 = arith.constant 0 : i32
    return %arg0, %c0_i32 : i32, i32
  }
  func.func @transform_3(%arg0: i32) -> (i32, i32) {
    %c0_i32 = arith.constant 0 : i32
    %c0_i32_0 = arith.constant 0 : i32
    return %arg0, %c0_i32 : i32, i32
  }
}

</mosaic_0001>

<llo_original>
// kernel: tpu_custom_call.1
$region0: #{tpu_custom_call.1}
  #allocation0 [shape = 'u32[]', space=smem, size = 0x4, offset = 0x4, fixed_abs, tag = 'smem constant byte address 0x4 - core index']
  #allocation1 [shape = 'u32[144,128]{1,0:T(1,128)}', space=vmem, size = 0x12000, scoped, tag = 'internal scratch']
  #allocation2 [shape = 'f32[1,1]{1,0:T(1,128)S(6)}', space=smem, size = 0x200, scoped, tag = 'scoped memory for tpu_custom_call.1']
  #allocation3 [shape = 'f32[1,1]{1,0:T(1,128)S(6)}', space=smem, size = 0x200, scoped, tag = 'scoped memory for tpu_custom_call.1']
  %s0 = inlined_call_operand.<no memory space> [shape: f32[1,1], index: 0, kind: input, shape index: {}]
  %s1 = inlined_call_operand.<no memory space> [shape: f32[1,1], index: 1, kind: input, shape index: {}]
  %s2 = inlined_call_operand.vmem [shape: f32[1,128], index: 2, kind: input, shape index: {}]
  %s3 = inlined_call_operand.hbm [shape: f32[1,128], index: 3, kind: output, shape index: {}]
  %s4 = sld [smem:[#allocation0]]
  $region22: #{tpu_custom_call.1} parent=0
    _
  %s6 = ssub.s32 1, %s4
  %s7 = scalar_select 0, %s6, %s4
  %8 = sst [smem:[#allocation2]] %s0
  %9 = sst [smem:[#allocation3]] %s1
  $region1: #{tpu_custom_call.1} parent=0
    #allocation4 [shape = 'u8[512]{0}', space=vmem, size = 0x400, scoped, tag = 'output window, operand 0, single buffered']
    #allocation5 [shape = 's32[1]{0}', space=sflag, size = 0x4, scoped, tag = 'scoped memory for tpu_custom_call.1']
    %10 = vsyncpa [#allocation5], 0
    // Predicated region
    $region2: #{tpu_custom_call.1} parent=1 // pred_check
      _
    $region3: #{tpu_custom_call.1} parent=1 // pred_check_branch
      %12 = sbr.rel (0) target = $region5
    $region4: #{tpu_custom_call.1} parent=1 // pred_region
      _
    $region5: #{tpu_custom_call.1} parent=1 // pred_fallthru
      _
    // Predicated region
    $region6: #{tpu_custom_call.1} parent=1 // pred_check
      _
    $region7: #{tpu_custom_call.1} parent=1 // pred_check_branch
      %14 = sbr.rel (0) target = $region9
    $region8: #{tpu_custom_call.1} parent=1 // pred_region
      _
    $region9: #{tpu_custom_call.1} parent=1 // pred_fallthru
      _
    // Predicated region
    $region10: #{tpu_custom_call.1} parent=1 // pred_check
      _
    $region11: #{tpu_custom_call.1} parent=1 // pred_check_branch
      %16 = sbr.rel (0) target = $region13
    $region12: #{tpu_custom_call.1} parent=1 // pred_region
      _
    $region13: #{tpu_custom_call.1} parent=1 // pred_fallthru
      _
    %s17 = sld [smem:[#allocation2]]
    %s18 = sld [smem:[#allocation3]]
    %v19 = vld [vmem:[%s2] sm:$0x1]
    %v20 = vstv %s17
    %v21 = vmul.f32 %v19, %v20
    %v22 = vstv %s18
    %v23 = vadd.f32 %v21, %v22
    %24 = vst [vmem:[#allocation4] sm:$0x1] %v23
    // Predicated region
    $region14: #{tpu_custom_call.1} parent=1 // pred_check
      _
    $region15: #{tpu_custom_call.1} parent=1 // pred_check_branch
      %26 = sbr.rel (0) target = $region17
    $region16: #{tpu_custom_call.1} parent=1 // pred_region
      %s28 = ssub.s32 16, 16
      %29 = vsyncadd [#allocation5], %s28
      %s31 = sshll.u32 [#allocation4], 4
      %s32 = int_to_ptr.vmem [resolvable:$true] %s31
      %34 = dma.vmem_to_hbm [thread:$0]  %s32, 16, %s3, [#allocation5]
    $region17: #{tpu_custom_call.1} parent=1 // pred_fallthru
      _
    // Predicated region
    $region18: #{tpu_custom_call.1} parent=1 // pred_check
      _
    $region19: #{tpu_custom_call.1} parent=1 // pred_check_branch
      %36 = sbr.rel (0) target = $region21
    $region20: #{tpu_custom_call.1} parent=1 // pred_region
      %37 = dma.done [#allocation5], 16
    $region21: #{tpu_custom_call.1} parent=1 // pred_fallthru
      _
    %38 = vsyncpa [#allocation5], 1

</llo_original>
